<compile_context>
chip_gen: v7x
topology: tpu7x:2x2x1
jax: 0.10.0
libtpu: 0.0.40
codegen_flags: <defaults>
</compile_context>

<pallas_src>
import jax
import jax.numpy as jnp
from jax.experimental import pallas as pl
from jax.experimental.pallas import tpu as pltpu


def _round_up(x: int, m: int) -> int:
    return ((x + m - 1) // m) * m


def _lane_pad(dim: int) -> int:
    # 256-wide panels feed the v6e/v7x 256x256 MXU at full width; for small dims the
    # extra zero padding is not worth it (and v5e's 128x128 MXUs are fine with 128).
    return _round_up(dim, 256 if dim >= 256 else 128)


def _physical_vmem_bytes() -> int:
    try:
        return int(pltpu.get_tpu_info().vmem_capacity_bytes)
    except Exception:
        return 64 << 20  # be conservative (v7x per-core VMEM)


_OUT_BYTES = 4  # kernel output tiles are f32


# ---------------------------------------------------------------------------
# Kernels
# ---------------------------------------------------------------------------

def _mlp_resident_kernel(x_ref, w1t_ref, w2t_ref, o_ref):
    """Both (padded) weight matrices resident in VMEM; grid = batch tiles."""
    z1 = jnp.dot(x_ref[...], w1t_ref[...], preferred_element_type=jnp.float32)
    a1 = jnp.maximum(z1, 0.0)  # VPU; free filler under MXU slack
    o_ref[...] = jnp.dot(a1.astype(w2t_ref.dtype), w2t_ref[...],
                         preferred_element_type=jnp.float32).astype(o_ref.dtype)


def _mlp_coltiled_kernel(x_ref, w1t_ref, w2t_ref, o_ref, a1_ref):
    """Large-width path: grid = (batch tiles, output-column panels).

    fc1 + ReLU run once per batch tile (j == 0) into the a1 VMEM scratch; every
    j step then only does the fc2 panel matmul, so just w1t and one (wp, tn)
    panel of w2t need to be resident in VMEM at a time.
    """
    @pl.when(pl.program_id(1) == 0)
    def _():
        z1 = jnp.dot(x_ref[...], w1t_ref[...], preferred_element_type=jnp.float32)
        a1_ref[...] = jnp.maximum(z1, 0.0).astype(a1_ref.dtype)

    o_ref[...] = jnp.dot(a1_ref[...], w2t_ref[...],
                         preferred_element_type=jnp.float32).astype(o_ref.dtype)


# ---------------------------------------------------------------------------
# Host-side prep / dispatch
# ---------------------------------------------------------------------------

def prepare_params(w1, w2, compute_dtype=jnp.bfloat16):
    """One-time weight prep (do NOT call per forward).

    w1: (width, input_size), w2: (output_size, width) -- PyTorch Linear layout.
    Returns weights transposed to (in, out) layout, cast to compute_dtype, and
    zero-padded so the hidden/output lane dims are MXU/lane aligned. Zero padding
    is exact: padded a1 columns are relu(0)=0 and padded w2t rows are 0, so padded
    lanes contribute nothing; extra output columns are sliced off outside the kernel.
    """
    width, input_size = w1.shape
    output_size, width2 = w2.shape
    assert width2 == width, "w1/w2 width mismatch"
    wp = _lane_pad(width)
    np_ = _lane_pad(output_size)
    w1t = jnp.zeros((input_size, wp), compute_dtype).at[:, :width].set(
        w1.T.astype(compute_dtype))
    w2t = jnp.zeros((wp, np_), compute_dtype).at[:width, :output_size].set(
        w2.T.astype(compute_dtype))
    return w1t, w2t, (input_size, width, output_size)


def _select_config(B, k_in, wp, np_, itemsize, budget):
    """Pick (mode, tm, tn, vmem_needed) under the per-core VMEM budget."""
    row_align = 16 if itemsize < 4 else 8  # bf16 packs 16 rows per vreg
    if B <= 128:
        tm_cands = [_round_up(B, row_align)]
    else:
        tm_cands = [t for t in (512, 256, 128) if t <= _round_up(B, 128)]
        # keep >= 2 batch grid steps so v7x megacore has work on both TensorCores
        big = [t for t in tm_cands if pl.cdiv(B, t) >= 2]
        tm_cands = big if big else [128]

    def resident_bytes(tm):
        return (2 * tm * k_in * itemsize          # x tiles (double-buffered)
                + k_in * wp * itemsize            # w1t (Buffered(1), resident)
                + wp * np_ * itemsize             # w2t (Buffered(1), resident)
                + 2 * tm * np_ * _OUT_BYTES       # out tiles (f32, double-buffered)
                + tm * wp * 4)                    # z1/a1 live intermediate

    def coltiled_bytes(tm, tn):
        return (2 * tm * k_in * itemsize
                + k_in * wp * itemsize            # w1t resident
                + 2 * wp * tn * itemsize          # w2t panel (double-buffered)
                + 2 * tm * tn * _OUT_BYTES
                + tm * wp * itemsize              # a1 scratch
                + tm * wp * 4)                    # z1 intermediate

    for tm in tm_cands:
        need = resident_bytes(tm)
        if need <= budget:
            return "resident", tm, np_, need

    tn_cands = [t for t in (512, 256, 128) if t <= np_ and np_ % t == 0]
    for tm in tm_cands:
        for tn in tn_cands:
            need = coltiled_bytes(tm, tn)
            if need <= budget:
                return "coltiled", tm, tn, need

    # Last resort: smallest tiles; vmem_limit will be raised as far as allowed.
    tm, tn = tm_cands[-1], tn_cands[-1]
    return "coltiled", tm, tn, coltiled_bytes(tm, tn)


def two_layer_relu_forward(x, params, *, use_pallas=None, _force_tiles=None):
    """x: (B, input_size) -> (B, output_size). Matches y = relu(x @ W1.T) @ W2.T."""
    w1t, w2t, (input_size, width, output_size) = params
    assert x.shape[-1] == input_size
    compute_dtype = w1t.dtype
    B = x.shape[0]
    k_in, wp = w1t.shape
    _, np_ = w2t.shape
    itemsize = jnp.dtype(compute_dtype).itemsize

    # Tiny problems: the MXU is nearly idle and the pallas_call fixed cost dominates;
    # let XLA fuse it unless the caller explicitly asks for the Pallas path.
    if use_pallas is None:
        use_pallas = (B * wp > 128 * 128) or (B * np_ > 128 * 128)
    if not use_pallas:
        a1 = jnp.maximum(jnp.dot(x.astype(compute_dtype), w1t,
                                 preferred_element_type=jnp.float32), 0.0)
        z2 = jnp.dot(a1.astype(compute_dtype), w2t,
                     preferred_element_type=jnp.float32)
        return z2[:, :output_size].astype(x.dtype)

    phys_vmem = _physical_vmem_bytes()
    budget = (3 * phys_vmem) // 4  # ~48 MiB on v7x, ~96 MiB on v5e/v6e

    if _force_tiles is not None:  # testing hook
        mode, tm, tn = _force_tiles
        vmem_needed = 0
    else:
        mode, tm, tn, vmem_needed = _select_config(B, k_in, wp, np_, itemsize, budget)

    bp = _round_up(B, tm)
    xk = x.astype(compute_dtype)
    if bp != B:
        xk = jnp.pad(xk, ((0, bp - B), (0, 0)))

    flops = 2 * bp * (k_in * wp + wp * np_)
    bytes_accessed = ((bp * k_in + k_in * wp + wp * np_) * itemsize
                      + bp * np_ * _OUT_BYTES)
    cost = pl.CostEstimate(flops=flops, transcendentals=0,
                           bytes_accessed=bytes_accessed)

    if mode == "resident":
        grid = (bp // tm,)
        in_specs = [
            pl.BlockSpec((tm, k_in), lambda i: (i, 0)),
            # Constant-index weights: single-buffered (double-buffering them only
            # wastes VMEM), resident across all batch tiles.
            pl.BlockSpec((k_in, wp), lambda i: (0, 0), pipeline_mode=pl.Buffered(1)),
            pl.BlockSpec((wp, np_), lambda i: (0, 0), pipeline_mode=pl.Buffered(1)),
        ]
        out_specs = pl.BlockSpec((tm, np_), lambda i: (i, 0))
        scratch_shapes = ()
        dim_sem = ("parallel",)
        kernel = _mlp_resident_kernel
    else:
        grid = (bp // tm, np_ // tn)
        in_specs = [
            pl.BlockSpec((tm, k_in), lambda i, j: (i, 0)),
            pl.BlockSpec((k_in, wp), lambda i, j: (0, 0), pipeline_mode=pl.Buffered(1)),
            pl.BlockSpec((wp, tn), lambda i, j: (0, j)),  # streamed output panels
        ]
        out_specs = pl.BlockSpec((tm, tn), lambda i, j: (i, j))
        scratch_shapes = (pltpu.VMEM((tm, wp), compute_dtype),)  # a1, reused over j
        dim_sem = ("parallel", "arbitrary")
        kernel = _mlp_coltiled_kernel

    cp_kwargs = dict(dimension_semantics=dim_sem)
    # v5e's default scoped VMEM limit is only 16 MiB (v6e/v7x: 32 MiB); raise it
    # explicitly whenever we might exceed that, capped at ~3/4 of physical VMEM.
    if vmem_needed > (12 << 20):
        cp_kwargs["vmem_limit_bytes"] = int(
            min(budget, max(vmem_needed * 5 // 4, 32 << 20)))

    out_padded = pl.pallas_call(
        kernel,
        out_shape=jax.ShapeDtypeStruct((bp, np_), jnp.float32),
        grid=grid,
        in_specs=in_specs,
        out_specs=out_specs,
        scratch_shapes=scratch_shapes,
        compiler_params=pltpu.CompilerParams(**cp_kwargs),
        cost_estimate=cost,
    )(xk, w1t, w2t)

    # Slice batch / lane padding off outside the kernel.
    return out_padded[:B, :output_size].astype(x.dtype)


if __name__ == "__main__":
    # Module hyperparameters (small, consistent with the forward pass).
    batch = 8
    input_size = 32
    width = 64
    output_size = 16
    scale_init_factor = 0.5  # exercised via scaled kaiming-uniform-like init

    key = jax.random.PRNGKey(0)
    kx, k1, k2 = jax.random.split(key, 3)

    x = jax.random.normal(kx, (batch, input_size), dtype=jnp.float32)

    # Deterministic kaiming-uniform-style init (fan_in, relu gain) scaled by
    # scale_init_factor, mirroring scale_init().
    bound1 = jnp.sqrt(6.0 / input_size)
    w1 = jax.random.uniform(k1, (width, input_size), minval=-bound1, maxval=bound1,
                            dtype=jnp.float32) * scale_init_factor
    bound2 = jnp.sqrt(6.0 / width)
    w2 = jax.random.uniform(k2, (output_size, width), minval=-bound2, maxval=bound2,
                            dtype=jnp.float32) * scale_init_factor

    ref = jnp.maximum(x @ w1.T, 0.0) @ w2.T

    # 1) Exact-precision path (f32 compute). use_pallas=True forces the kernel even
    #    at this tiny demo shape (the auto heuristic would hand it to XLA).
    params_f32 = prepare_params(w1, w2, jnp.float32)
    out_f32 = jax.block_until_ready(
        two_layer_relu_forward(x, params_f32, use_pallas=True))
    assert out_f32.shape == (batch, output_size)
    assert jnp.allclose(out_f32, ref, atol=1e-5, rtol=1e-5)

    # 2) Default perf path (bf16 operands, f32 MXU accumulation) — looser tolerance.
    params_bf16 = prepare_params(w1, w2)  # bf16 by default
    out_bf16 = jax.block_until_ready(
        two_layer_relu_forward(x, params_bf16, use_pallas=True))
    assert out_bf16.shape == (batch, output_size)
    assert jnp.allclose(out_bf16, ref, atol=3e-2, rtol=3e-2)

    # 3) Column-tiled large-width path, exercised explicitly at small scale so both
    #    the j==0 (fc1+ReLU into scratch) and j>0 (fc2 panel) branches run.
    b3, in3, wid3, out3 = 64, 48, 256, 512
    k3x, k31, k32 = jax.random.split(jax.random.PRNGKey(1), 3)
    x3 = jax.random.normal(k3x, (b3, in3), dtype=jnp.float32)
    w31 = jax.random.uniform(k31, (wid3, in3), minval=-0.1, maxval=0.1,
                             dtype=jnp.float32)
    w32 = jax.random.uniform(k32, (out3, wid3), minval=-0.1, maxval=0.1,
                             dtype=jnp.float32)
    ref3 = jnp.maximum(x3 @ w31.T, 0.0) @ w32.T
    params3 = prepare_params(w31, w32, jnp.float32)
    out3_arr = jax.block_until_ready(
        two_layer_relu_forward(x3, params3, use_pallas=True,
                               _force_tiles=("coltiled", 64, 256)))
    assert out3_arr.shape == (b3, out3)
    assert jnp.allclose(out3_arr, ref3, atol=1e-4, rtol=1e-4)

    print("KERNEL_OK")
</pallas_src>

<mosaic_0001>
module attributes {stable_mosaic.version = 11 : i64} {
  func.func @_mlp_resident_kernel(%arg0: i32, %arg1: memref<8x32xf32, #tpu.memory_space<vmem>>, %arg2: memref<32x128xf32, #tpu.memory_space<vmem>>, %arg3: memref<128x128xf32, #tpu.memory_space<vmem>>, %arg4: memref<8x128xf32, #tpu.memory_space<vmem>>) attributes {dimension_semantics = [#tpu.dimension_semantics<parallel>], iteration_bounds = array<i64: 1>, scalar_prefetch = 0 : i64, scratch_operands = 0 : i64, tpu.core_type = #tpu.core_type<tc>, window_params = [{transform_indices = @transform_0, window_bounds = array<i64: 8, 32>}, {pipeline_mode = #tpu.pipeline_mode<synchronous>, transform_indices = @transform_1, window_bounds = array<i64: 32, 128>}, {pipeline_mode = #tpu.pipeline_mode<synchronous>, transform_indices = @transform_2, window_bounds = array<i64: 128, 128>}, {transform_indices = @transform_3, window_bounds = array<i64: 8, 128>}]} {
    %c0 = arith.constant 0 : index
    %c0_0 = arith.constant 0 : index
    %0 = vector.load %arg1[%c0, %c0_0] : memref<8x32xf32, #tpu.memory_space<vmem>>, vector<8x32xf32>
    %c0_1 = arith.constant 0 : index
    %c0_2 = arith.constant 0 : index
    %1 = vector.load %arg2[%c0_1, %c0_2] : memref<32x128xf32, #tpu.memory_space<vmem>>, vector<32x128xf32>
    %cst = arith.constant dense<0.000000e+00> : vector<8x128xf32>
    %2 = tpu.matmul %0, %1, %cst {dimension_numbers = #tpu.dot_dimension_numbers<[1], [0], [0], [1], [0, 0, 1, 1], [], []>} : vector<8x32xf32>, vector<32x128xf32>, vector<8x128xf32> -> vector<8x128xf32>
    %cst_3 = arith.constant 0.000000e+00 : f32
    %3 = vector.broadcast %cst_3 : f32 to vector<8x128xf32>
    %4 = arith.maximumf %2, %3 : vector<8x128xf32>
    %c0_4 = arith.constant 0 : index
    %c0_5 = arith.constant 0 : index
    %5 = vector.load %arg3[%c0_4, %c0_5] : memref<128x128xf32, #tpu.memory_space<vmem>>, vector<128x128xf32>
    %cst_6 = arith.constant dense<0.000000e+00> : vector<8x128xf32>
    %6 = tpu.matmul %4, %5, %cst_6 {dimension_numbers = #tpu.dot_dimension_numbers<[1], [0], [0], [1], [0, 0, 1, 1], [], []>} : vector<8x128xf32>, vector<128x128xf32>, vector<8x128xf32> -> vector<8x128xf32>
    %c0_7 = arith.constant 0 : index
    %c0_8 = arith.constant 0 : index
    %7 = vector.load %arg4[%c0_7, %c0_8] : memref<8x128xf32, #tpu.memory_space<vmem>>, vector<8x128xf32>
    tpu.vector_store %arg4[%c0_7, %c0_8], %6 {strides = array<i32>} : memref<8x128xf32, #tpu.memory_space<vmem>>, vector<8x128xf32>,
    return
  }
  func.func @transform_0(%arg0: i32) -> (i32, i32) {
    %c0_i32 = arith.constant 0 : i32
    %c0_i32_0 = arith.constant 0 : i32
    return %arg0, %c0_i32 : i32, i32
  }
  func.func @transform_1(%arg0: i32) -> (i32, i32) {
    %c0_i32 = arith.constant 0 : i32
    %c0_i32_0 = arith.constant 0 : i32
    %c0_i32_1 = arith.constant 0 : i32
    return %c0_i32, %c0_i32_0 : i32, i32
  }
  func.func @transform_2(%arg0: i32) -> (i32, i32) {
    %c0_i32 = arith.constant 0 : i32
    %c0_i32_0 = arith.constant 0 : i32
    %c0_i32_1 = arith.constant 0 : i32
    return %c0_i32, %c0_i32_0 : i32, i32
  }
  func.func @transform_3(%arg0: i32) -> (i32, i32) {
    %c0_i32 = arith.constant 0 : i32
    %c0_i32_0 = arith.constant 0 : i32
    return %arg0, %c0_i32 : i32, i32
  }
}

</mosaic_0001>

<llo_original>
// kernel: tpu_custom_call.1
$region0: #{tpu_custom_call.1}
  #allocation0 [shape = 'u32[]', space=smem, size = 0x4, offset = 0x4, fixed_abs, tag = 'smem constant byte address 0x4 - core index']
  #allocation1 [shape = 'u32[144,128]{1,0:T(1,128)}', space=vmem, size = 0x12000, scoped, tag = 'internal scratch']
  %s0 = inlined_call_operand.hbm [shape: f32[8,32], index: 0, kind: input, shape index: {}]
  %s1 = inlined_call_operand.hbm [shape: f32[32,128], index: 1, kind: input, shape index: {}]
  %s2 = inlined_call_operand.hbm [shape: f32[128,128], index: 2, kind: input, shape index: {}]
  %s3 = inlined_call_operand.hbm [shape: f32[8,128], index: 3, kind: output, shape index: {}]
  %s4 = sld [smem:[#allocation0]]
  $region34: #{tpu_custom_call.1} parent=0
    _
  %s6 = ssub.s32 1, %s4
  %s7 = scalar_select 0, %s6, %s4
  $region1: #{tpu_custom_call.1} parent=0
    #allocation2 [shape = 'u8[4096]{0}', space=vmem, size = 0x1000, scoped, tag = 'input window, operand 0, single buffered']
    #allocation3 [shape = 's32[1]{0}', space=sflag, size = 0x4, scoped, tag = 'scoped memory for tpu_custom_call.1']
    #allocation4 [shape = 's32[1]{0}', space=sflag, size = 0x4, scoped, tag = 'scoped memory for tpu_custom_call.1']
    #allocation5 [shape = 'u8[16384]{0}', space=vmem, size = 0x4000, scoped, tag = 'input window, operand 1, single buffered']
    #allocation6 [shape = 's32[1]{0}', space=sflag, size = 0x4, scoped, tag = 'scoped memory for tpu_custom_call.1']
    #allocation7 [shape = 'u8[65536]{0}', space=vmem, size = 0x10000, scoped, tag = 'input window, operand 2, single buffered']
    #allocation8 [shape = 'u8[4096]{0}', space=vmem, size = 0x1000, scoped, tag = 'output window, operand 0, single buffered']
    %8 = vsyncpa [#allocation3], 0
    %9 = vsyncpa [#allocation6], 0
    %10 = vsyncpa [#allocation4], 0
    // Predicated region
    $region2: #{tpu_custom_call.1} parent=1 // pred_check
      _
    $region3: #{tpu_custom_call.1} parent=1 // pred_check_branch
      %12 = sbr.rel (0) target = $region5
    $region4: #{tpu_custom_call.1} parent=1 // pred_region
      %s14 = ssub.s32 128, 128
      %15 = vsyncadd [#allocation3], %s14
      %s17 = sshll.u32 [#allocation2], 4
      %s18 = int_to_ptr.vmem [resolvable:$true] %s17
      %20 = dma.hbm_to_vmem [thread:$0]  %s0, 128, %s18, [#allocation3]
    $region5: #{tpu_custom_call.1} parent=1 // pred_fallthru
      _
    // Predicated region
    $region6: #{tpu_custom_call.1} parent=1 // pred_check
      _
    $region7: #{tpu_custom_call.1} parent=1 // pred_check_branch
      %22 = sbr.rel (0) target = $region9
    $region8: #{tpu_custom_call.1} parent=1 // pred_region
      %s24 = ssub.s32 512, 512
      %25 = vsyncadd [#allocation6], %s24
      %s26 = sshll.u32 [#allocation5], 4
      %s27 = int_to_ptr.vmem [resolvable:$true] %s26
      %32 = dma.hbm_to_vmem [thread:$0]  %s1, 512, %s27, [#allocation6], 128, 128, 8
    $region9: #{tpu_custom_call.1} parent=1 // pred_fallthru
      _
    // Predicated region
    $region10: #{tpu_custom_call.1} parent=1 // pred_check
      _
    $region11: #{tpu_custom_call.1} parent=1 // pred_check_branch
      %34 = sbr.rel (0) target = $region13
    $region12: #{tpu_custom_call.1} parent=1 // pred_region
      %s36 = ssub.s32 2048, 2048
      %37 = vsyncadd [#allocation6], %s36
      %s38 = sshll.u32 [#allocation7], 4
      %s39 = int_to_ptr.vmem [resolvable:$true] %s38
      %44 = dma.hbm_to_vmem [thread:$0]  %s2, 2048, %s39, [#allocation6], 128, 128, 8
    $region13: #{tpu_custom_call.1} parent=1 // pred_fallthru
      _
    // Predicated region
    $region14: #{tpu_custom_call.1} parent=1 // pred_check
      _
    $region15: #{tpu_custom_call.1} parent=1 // pred_check_branch
      %46 = sbr.rel (0) target = $region17
    $region16: #{tpu_custom_call.1} parent=1 // pred_region
      %47 = dma.done [#allocation3], 128
    $region17: #{tpu_custom_call.1} parent=1 // pred_fallthru
      _
    // Predicated region
    $region18: #{tpu_custom_call.1} parent=1 // pred_check
      _
    $region19: #{tpu_custom_call.1} parent=1 // pred_check_branch
      %49 = sbr.rel (0) target = $region21
    $region20: #{tpu_custom_call.1} parent=1 // pred_region
      %50 = dma.done [#allocation6], 512
    $region21: #{tpu_custom_call.1} parent=1 // pred_fallthru
      _
    // Predicated region
    $region22: #{tpu_custom_call.1} parent=1 // pred_check
      _
    $region23: #{tpu_custom_call.1} parent=1 // pred_check_branch
      %52 = sbr.rel (0) target = $region25
    $region24: #{tpu_custom_call.1} parent=1 // pred_region
      %53 = dma.done [#allocation6], 2048
    $region25: #{tpu_custom_call.1} parent=1 // pred_fallthru
      _
    %v54 = vld [vmem:[#allocation2] sm:$0xff]
    %v55 = vld [vmem:[#allocation5] sm:$0xff]
    %v56 = vld [vmem:[#allocation5 + $0x8] sm:$0xff]
    %v57 = vld [vmem:[#allocation5 + $0x10] sm:$0xff]
    %v58 = vld [vmem:[#allocation5 + $0x18] sm:$0xff]
    %vm59 = vcmask 261120
    %v61 = vsel %vm59, %v54, 0
    %63 = vmatprep.subr.mxu0 0.0
    %64 = vmatpush1.msra.mxu0 %v55
    %65 = vmatprep.subr.mxu0 0.0
    %66 = vmatpush1.msra.mxu0 %v56
    %67 = vmatprep.subr.mxu0 0.0
    %68 = vmatpush1.msra.mxu0 %v57
    %69 = vmatprep.subr.mxu0 0.0
    %70 = vmatpush1.msra.mxu0 %v58
    %71 = vmatprep.subr.mxu0 0.0
    %72 = vmatpush1.msra.mxu0 0.0
    %73 = vmatprep.subr.mxu0 0.0
    %74 = vmatpush1.msra.mxu0 0.0
    %75 = vmatprep.subr.mxu0 0.0
    %76 = vmatpush1.msra.mxu0 0.0
    %77 = vmatprep.subr.mxu0 0.0
    %78 = vmatpush1.msra.mxu0 0.0
    %79 = vmatprep.subr.mxu0 0.0
    %80 = vmatpush1.msra.mxu0 0.0
    %81 = vmatprep.subr.mxu0 0.0
    %82 = vmatpush1.msra.mxu0 0.0
    %83 = vmatprep.subr.mxu0 0.0
    %84 = vmatpush1.msra.mxu0 0.0
    %85 = vmatprep.subr.mxu0 0.0
    %86 = vmatpush1.msra.mxu0 0.0
    %87 = vmatprep.subr.mxu0 0.0
    %88 = vmatpush1.msra.mxu0 0.0
    %89 = vmatprep.subr.mxu0 0.0
    %90 = vmatpush1.msra.mxu0 0.0
    %91 = vmatprep.subr.mxu0 0.0
    %92 = vmatpush1.msra.mxu0 0.0
    %93 = vmatprep.subr.mxu0 0.0
    %94 = vmatpush1.msra.mxu0 0.0
    %95 = vmatprep.subr.mxu0 0.0
    %96 = vmatpush1.msra.mxu0 0.0
    %97 = vmatprep.subr.mxu0 0.0
    %98 = vmatpush1.msra.mxu0 0.0
    %99 = vmatprep.subr.mxu0 0.0
    %100 = vmatpush1.msra.mxu0 0.0
    %101 = vmatprep.subr.mxu0 0.0
    %102 = vmatpush1.msra.mxu0 0.0
    %103 = vmatprep.subr.mxu0 0.0
    %104 = vmatpush1.msra.mxu0 0.0
    %105 = vmatprep.subr.mxu0 0.0
    %106 = vmatpush1.msra.mxu0 0.0
    %107 = vmatprep.subr.mxu0 0.0
    %108 = vmatpush1.msra.mxu0 0.0
    %109 = vmatprep.subr.mxu0 0.0
    %110 = vmatpush1.msra.mxu0 0.0
    %111 = vmatprep.subr.mxu0 0.0
    %112 = vmatpush1.msra.mxu0 0.0
    %113 = vmatprep.subr.mxu0 0.0
    %114 = vmatpush1.msra.mxu0 0.0
    %115 = vmatprep.subr.mxu0 0.0
    %116 = vmatpush1.msra.mxu0 0.0
    %117 = vmatprep.subr.mxu0 0.0
    %118 = vmatpush1.msra.mxu0 0.0
    %119 = vmatprep.subr.mxu0 0.0
    %120 = vmatpush1.msra.mxu0 0.0
    %121 = vmatprep.subr.mxu0 0.0
    %122 = vmatpush1.msra.mxu0 0.0
    %123 = vmatprep.subr.mxu0 0.0
    %124 = vmatpush1.msra.mxu0 0.0
    %125 = vmatprep.subr.mxu0 0.0
    %126 = vmatpush1.msra.mxu0 0.0
    %127 = vmatprep.mubr.f32.mxu0 0.0
    %128 = vmatmul.mubr.f32.gmra.mrb[0].mxu0 %v61
    %v129 = vpop.f32.mrb[0].mxu0
    %v130 = vadd.f32 0.0, %v129
    %v131 = vpop.f32.mrb[0].mxu0
    %132 = vdwg.mxu0
    %v133 = vmax.f32 %v130, 0.0
    %v134 = vld [vmem:[#allocation7] sm:$0xff]
    %v135 = vld [vmem:[#allocation7 + $0x8] sm:$0xff]
    %v136 = vld [vmem:[#allocation7 + $0x10] sm:$0xff]
    %v137 = vld [vmem:[#allocation7 + $0x18] sm:$0xff]
    %v138 = vld [vmem:[#allocation7 + $0x20] sm:$0xff]
    %v139 = vld [vmem:[#allocation7 + $0x28] sm:$0xff]
    %v140 = vld [vmem:[#allocation7 + $0x30] sm:$0xff]
    %v141 = vld [vmem:[#allocation7 + $0x38] sm:$0xff]
    %v142 = vld [vmem:[#allocation7 + $0x40] sm:$0xff]
    %v143 = vld [vmem:[#allocation7 + $0x48] sm:$0xff]
    %v144 = vld [vmem:[#allocation7 + $0x50] sm:$0xff]
    %v145 = vld [vmem:[#allocation7 + $0x58] sm:$0xff]
    %v146 = vld [vmem:[#allocation7 + $0x60] sm:$0xff]
    %v147 = vld [vmem:[#allocation7 + $0x68] sm:$0xff]
    %v148 = vld [vmem:[#allocation7 + $0x70] sm:$0xff]
    %v149 = vld [vmem:[#allocation7 + $0x78] sm:$0xff]
    %150 = vmatprep.subr.mxu0 0.0
    %151 = vmatpush1.msra.mxu0 %v134
    %152 = vmatprep.subr.mxu0 0.0
    %153 = vmatpush1.msra.mxu0 %v135
    %154 = vmatprep.subr.mxu0 0.0
    %155 = vmatpush1.msra.mxu0 %v136
    %156 = vmatprep.subr.mxu0 0.0
    %157 = vmatpush1.msra.mxu0 %v137
    %158 = vmatprep.subr.mxu0 0.0
    %159 = vmatpush1.msra.mxu0 %v138
    %160 = vmatprep.subr.mxu0 0.0
    %161 = vmatpush1.msra.mxu0 %v139
    %162 = vmatprep.subr.mxu0 0.0
    %163 = vmatpush1.msra.mxu0 %v140
    %164 = vmatprep.subr.mxu0 0.0
    %165 = vmatpush1.msra.mxu0 %v141
    %166 = vmatprep.subr.mxu0 0.0
    %167 = vmatpush1.msra.mxu0 %v142
    %168 = vmatprep.subr.mxu0 0.0
    %169 = vmatpush1.msra.mxu0 %v143
    %170 = vmatprep.subr.mxu0 0.0
    %171 = vmatpush1.msra.mxu0 %v144
    %172 = vmatprep.subr.mxu0 0.0
    %173 = vmatpush1.msra.mxu0 %v145
    %174 = vmatprep.subr.mxu0 0.0
    %175 = vmatpush1.msra.mxu0 %v146
    %176 = vmatprep.subr.mxu0 0.0
    %177 = vmatpush1.msra.mxu0 %v147
    %178 = vmatprep.subr.mxu0 0.0
    %179 = vmatpush1.msra.mxu0 %v148
    %180 = vmatprep.subr.mxu0 0.0
    %181 = vmatpush1.msra.mxu0 %v149
    %182 = vmatprep.subr.mxu0 0.0
    %183 = vmatpush1.msra.mxu0 0.0
    %184 = vmatprep.subr.mxu0 0.0
    %185 = vmatpush1.msra.mxu0 0.0
    %186 = vmatprep.subr.mxu0 0.0
    %187 = vmatpush1.msra.mxu0 0.0
    %188 = vmatprep.subr.mxu0 0.0
    %189 = vmatpush1.msra.mxu0 0.0
    %190 = vmatprep.subr.mxu0 0.0
    %191 = vmatpush1.msra.mxu0 0.0
    %192 = vmatprep.subr.mxu0 0.0
    %193 = vmatpush1.msra.mxu0 0.0
    %194 = vmatprep.subr.mxu0 0.0
    %195 = vmatpush1.msra.mxu0 0.0
    %196 = vmatprep.subr.mxu0 0.0
    %197 = vmatpush1.msra.mxu0 0.0
    %198 = vmatprep.subr.mxu0 0.0
    %199 = vmatpush1.msra.mxu0 0.0
    %200 = vmatprep.subr.mxu0 0.0
    %201 = vmatpush1.msra.mxu0 0.0
    %202 = vmatprep.subr.mxu0 0.0
    %203 = vmatpush1.msra.mxu0 0.0
    %204 = vmatprep.subr.mxu0 0.0
    %205 = vmatpush1.msra.mxu0 0.0
    %206 = vmatprep.subr.mxu0 0.0
    %207 = vmatpush1.msra.mxu0 0.0
    %208 = vmatprep.subr.mxu0 0.0
    %209 = vmatpush1.msra.mxu0 0.0
    %210 = vmatprep.subr.mxu0 0.0
    %211 = vmatpush1.msra.mxu0 0.0
    %212 = vmatprep.subr.mxu0 0.0
    %213 = vmatpush1.msra.mxu0 0.0
    %214 = vmatprep.mubr.f32.mxu0 0.0
    %215 = vmatmul.mubr.f32.gmra.mrb[0].mxu0 %v133
    %v216 = vpop.f32.mrb[0].mxu0
    %v217 = vadd.f32 0.0, %v216
    %v218 = vpop.f32.mrb[0].mxu0
    %219 = vdwg.mxu0
    %220 = vst [vmem:[#allocation8] sm:$0xff] %v217
    // Predicated region
    $region26: #{tpu_custom_call.1} parent=1 // pred_check
      _
    $region27: #{tpu_custom_call.1} parent=1 // pred_check_branch
      %222 = sbr.rel (0) target = $region29
    $region28: #{tpu_custom_call.1} parent=1 // pred_region
      %s224 = ssub.s32 128, 128
      %225 = vsyncadd [#allocation4], %s224
      %s227 = sshll.u32 [#allocation8], 4
      %s228 = int_to_ptr.vmem [resolvable:$true] %s227
      %230 = dma.vmem_to_hbm [thread:$0]  %s228, 128, %s3, [#allocation4]
    $region29: #{tpu_custom_call.1} parent=1 // pred_fallthru
      _
    // Predicated region
    $region30: #{tpu_custom_call.1} parent=1 // pred_check
      _
    $region31: #{tpu_custom_call.1} parent=1 // pred_check_branch
      %232 = sbr.rel (0) target = $region33
    $region32: #{tpu_custom_call.1} parent=1 // pred_region
      %233 = dma.done [#allocation4], 128
    $region33: #{tpu_custom_call.1} parent=1 // pred_fallthru
      _
    %234 = vsyncpa [#allocation3], 1
    %235 = vsyncpa [#allocation6], 1
    %236 = vsyncpa [#allocation4], 1

</llo_original>
